<compile_context>
chip_gen: v6e
topology: v6e:2x2x1
jax: 0.10.0
libtpu: 0.0.40
codegen_flags: <defaults>
</compile_context>

<pallas_src>
import functools

import jax
import jax.numpy as jnp
from jax import lax
from jax.experimental import pallas as pl
from jax.experimental.pallas import tpu as pltpu

LANES = 128
SUBLANES = 8
ALIGN = SUBLANES * LANES            # 1024 elements = one (8,128) f32 tile
MAX_BLOCK_ROWS = 4096               # (4096,128) f32 = 2 MiB per input block
NUM_SLICES = 2                      # leading "parallel" axis (both TCs on v7x)
VMEM_LIMIT_BYTES = 32 * 1024 * 1024


# ---------------------------------------------------------------------------
# In-kernel helpers
# ---------------------------------------------------------------------------
def _vreg_sum(contrib):
    """Fold a (block_rows, 128) value into one (8, 128) vreg with VPU adds."""
    return contrib.reshape(-1, SUBLANES, LANES).sum(axis=0)


def _row_mask(block_rows, rows_valid):
    """Row-validity mask (local threshold, no flat-index int32 overflow)."""
    r = lax.broadcasted_iota(jnp.int32, (block_rows, LANES), 0)
    return r < rows_valid


# ---------------------------------------------------------------------------
# Kernels
# ---------------------------------------------------------------------------
def _unc_loss_kernel(bvar_ref, x_ref, tgt_ref, out_ref, acc_ref, *,
                     rows, block_rows, steps_per_slice):
    """Partial sums of (mean-tgt)^2/var + log(var) over var != 0, var=x[1]+base_var."""
    c = pl.program_id(0)            # slice (TensorCore) index
    s = pl.program_id(1)            # reduction step within the slice

    @pl.when(s == 0)
    def _():
        acc_ref[...] = jnp.zeros_like(acc_ref)

    mean = x_ref[0].astype(jnp.float32)
    var = x_ref[1].astype(jnp.float32) + bvar_ref[0]      # fused base_var add
    tgt = tgt_ref[...].astype(jnp.float32)

    nz = var != 0.0                                       # torch `var != 0`
    var_safe = jnp.where(nz, var, 1.0)                    # no 0-div / log(0)
    diff = mean - tgt
    # approx=True -> EUP vrcp (free slot when HBM-bound); use approx=False for
    # bit-closer parity with torch's exact division if ever required.
    inv_var = pl.reciprocal(var_safe, approx=True)
    # TODO(synk): if a v7x bundle dump shows the single EUP slot binding,
    #             halve the log pushes via pairwise log(a*b) = log(a)+log(b).
    contrib = jnp.where(nz, diff * diff * inv_var + jnp.log(var_safe), 0.0)

    row_start = (c * steps_per_slice + s) * block_rows
    needs_mask = row_start + block_rows > rows            # scalar per step

    @pl.when(jnp.logical_not(needs_mask))
    def _():
        acc_ref[...] += _vreg_sum(contrib)

    @pl.when(needs_mask)
    def _():
        masked = jnp.where(_row_mask(block_rows, rows - row_start), contrib, 0.0)
        acc_ref[...] += _vreg_sum(masked)

    @pl.when(s == pl.num_programs(1) - 1)
    def _():
        out_ref[...] = acc_ref[...]                       # (8,128) per-slice partial


def _mse_sum_kernel(x_ref, tgt_ref, out_ref, acc_ref, *,
                    rows, block_rows, steps_per_slice):
    """Partial sums of (x - target)^2 (F.mse_loss reduction='sum')."""
    c = pl.program_id(0)
    s = pl.program_id(1)

    @pl.when(s == 0)
    def _():
        acc_ref[...] = jnp.zeros_like(acc_ref)

    d = x_ref[...].astype(jnp.float32) - tgt_ref[...].astype(jnp.float32)
    contrib = d * d

    row_start = (c * steps_per_slice + s) * block_rows
    needs_mask = row_start + block_rows > rows

    @pl.when(jnp.logical_not(needs_mask))
    def _():
        acc_ref[...] += _vreg_sum(contrib)

    @pl.when(needs_mask)
    def _():
        masked = jnp.where(_row_mask(block_rows, rows - row_start), contrib, 0.0)
        acc_ref[...] += _vreg_sum(masked)

    @pl.when(s == pl.num_programs(1) - 1)
    def _():
        out_ref[...] = acc_ref[...]


# ---------------------------------------------------------------------------
# Glue
# ---------------------------------------------------------------------------
def _tiling(rows):
    block_rows = min(MAX_BLOCK_ROWS, rows)                # rows % 8 == 0 always
    num_row_blocks = pl.cdiv(rows, block_rows)
    steps_per_slice = pl.cdiv(num_row_blocks, NUM_SLICES)
    return block_rows, num_row_blocks, steps_per_slice


def _call_partial_sum(kernel, inputs, in_specs, steps_per_slice):
    out = pl.pallas_call(
        kernel,
        out_shape=jax.ShapeDtypeStruct((NUM_SLICES * SUBLANES, LANES), jnp.float32),
        grid=(NUM_SLICES, steps_per_slice),
        in_specs=in_specs,
        out_specs=pl.BlockSpec((SUBLANES, LANES), lambda c, s: (c, 0)),
        scratch_shapes=[pltpu.VMEM((SUBLANES, LANES), jnp.float32)],
        compiler_params=pltpu.CompilerParams(
            dimension_semantics=("parallel", "arbitrary"),
            vmem_limit_bytes=VMEM_LIMIT_BYTES),
    )(*inputs)
    return jnp.sum(out)          # tiny (2*8,128) reduce done by XLA


def criterion_forward(x, target, *, uncertainty=False, unc=True, base_var=None):
    """Mirror of Criterion.forward (PyTorch)."""
    if uncertainty and unc:
        x2 = x.reshape(2, -1)
        tgt = target.reshape(-1)
        n = tgt.shape[0]
        n_main = (n // ALIGN) * ALIGN
        bvar = jnp.asarray(base_var, jnp.float32).reshape(1)

        total = jnp.float32(0.0)
        if n_main > 0:
            rows = n_main // LANES
            block_rows, num_row_blocks, steps_per_slice = _tiling(rows)
            max_blk = num_row_blocks - 1

            def rb(c, s):  # clamped row-block index (never DMAs OOB)
                return jnp.minimum(c * steps_per_slice + s, max_blk)

            x_main = (x2[:, :n_main] if n_main < n else x2).reshape(2, rows, LANES)
            t_main = (tgt[:n_main] if n_main < n else tgt).reshape(rows, LANES)

            kernel = functools.partial(
                _unc_loss_kernel, rows=rows, block_rows=block_rows,
                steps_per_slice=steps_per_slice)
            in_specs = [
                pl.BlockSpec(memory_space=pltpu.SMEM),                       # base_var
                pl.BlockSpec((2, block_rows, LANES),
                             lambda c, s: (0, rb(c, s), 0)),                 # x (mean, raw var)
                pl.BlockSpec((block_rows, LANES),
                             lambda c, s: (rb(c, s), 0)),                    # target
            ]
            total = total + _call_partial_sum(
                kernel, (bvar, x_main, t_main), in_specs, steps_per_slice)

        if n_main < n:   # <=1023-element ragged tail: plain-JAX epilogue
            mean_t = x2[0, n_main:].astype(jnp.float32)
            var_t = x2[1, n_main:].astype(jnp.float32) + bvar[0]
            tgt_t = tgt[n_main:].astype(jnp.float32)
            m = var_t != 0.0
            var_s = jnp.where(m, var_t, 1.0)
            d = mean_t - tgt_t
            total = total + jnp.sum(jnp.where(m, d * d / var_s + jnp.log(var_s), 0.0))

        return 0.5 * total
    else:
        x_flat = x.reshape(-1)
        tgt = target.reshape(-1)
        n = x_flat.shape[0]
        n_main = (n // ALIGN) * ALIGN

        total = jnp.float32(0.0)
        if n_main > 0:
            rows = n_main // LANES
            block_rows, num_row_blocks, steps_per_slice = _tiling(rows)
            max_blk = num_row_blocks - 1

            def rb(c, s):
                return jnp.minimum(c * steps_per_slice + s, max_blk)

            x_main = (x_flat[:n_main] if n_main < n else x_flat).reshape(rows, LANES)
            t_main = (tgt[:n_main] if n_main < n else tgt).reshape(rows, LANES)

            kernel = functools.partial(
                _mse_sum_kernel, rows=rows, block_rows=block_rows,
                steps_per_slice=steps_per_slice)
            in_specs = [
                pl.BlockSpec((block_rows, LANES), lambda c, s: (rb(c, s), 0)),
                pl.BlockSpec((block_rows, LANES), lambda c, s: (rb(c, s), 0)),
            ]
            total = total + _call_partial_sum(
                kernel, (x_main, t_main), in_specs, steps_per_slice)

        if n_main < n:
            d = x_flat[n_main:].astype(jnp.float32) - tgt[n_main:].astype(jnp.float32)
            total = total + jnp.sum(d * d)

        return total


# ---------------------------------------------------------------------------
# Demo / self-test
# ---------------------------------------------------------------------------
def _ref_unc(x, target, base_var):
    mean, var_raw = x[0], x[1]
    var = var_raw + base_var
    m = var != 0
    l1 = jnp.sum(jnp.where(m, (mean - target) ** 2 / var, 0.0))
    l2 = jnp.sum(jnp.where(m, jnp.log(var), 0.0))
    return 0.5 * (l1 + l2)


def _ref_mse(x, target):
    return jnp.sum((x - target) ** 2)


if __name__ == "__main__":
    key = jax.random.PRNGKey(0)
    base_var = jnp.float32(0.5)     # nn.Parameter(torch.Tensor([0.5]))

    unc_fn = jax.jit(functools.partial(criterion_forward, uncertainty=True, unc=True))
    mse_fn = jax.jit(functools.partial(criterion_forward, uncertainty=False))

    # Shapes: aligned (1024 elems), unaligned (1088 elems -> kernel + tail),
    # tiny (<1024 elems -> pure-JAX fallback path).
    shapes = [(4, 16, 16), (4, 17, 16), (3, 5, 7)]
    results = []

    for shape in shapes:
        key, k_mean, k_var, k_tgt, k_x = jax.random.split(key, 5)
        mean = jax.random.normal(k_mean, shape, jnp.float32)
        var_raw = jax.random.uniform(k_var, shape, jnp.float32, minval=0.1, maxval=1.0)
        x_unc = jnp.stack([mean, var_raw], axis=0)
        target = jax.random.normal(k_tgt, shape, jnp.float32)
        x_mse = jax.random.normal(k_x, shape, jnp.float32)

        loss_u = unc_fn(x_unc, target, base_var=base_var)
        loss_m = mse_fn(x_mse, target)
        ref_u = _ref_unc(x_unc, target, base_var)
        ref_m = _ref_mse(x_mse, target)
        results.append((shape, loss_u, ref_u, loss_m, ref_m))

    jax.block_until_ready(results)

    for shape, loss_u, ref_u, loss_m, ref_m in results:
        # Loose tolerance on the unc loss accounts for the approximate EUP
        # reciprocal; the MSE path is exact f32.
        assert jnp.allclose(loss_u, ref_u, rtol=5e-3, atol=1e-2), (shape, loss_u, ref_u)
        assert jnp.allclose(loss_m, ref_m, rtol=1e-4, atol=1e-3), (shape, loss_m, ref_m)

    print("KERNEL_OK")
</pallas_src>

<mosaic_0001>
module attributes {stable_mosaic.version = 11 : i64} {
  func.func @_unc_loss_kernel(%arg0: i32, %arg1: i32, %arg2: memref<1xf32, #tpu.memory_space<smem>>, %arg3: memref<2x8x128xf32, #tpu.memory_space<vmem>>, %arg4: memref<8x128xf32, #tpu.memory_space<vmem>>, %arg5: memref<8x128xf32, #tpu.memory_space<vmem>>, %arg6: memref<8x128xf32, #tpu.memory_space<vmem>>) attributes {dimension_semantics = [#tpu.dimension_semantics<parallel>, #tpu.dimension_semantics<arbitrary>], iteration_bounds = array<i64: 2, 1>, scalar_prefetch = 0 : i64, scratch_operands = 1 : i64, tpu.core_type = #tpu.core_type<tc>, window_params = [{transform_indices = @transform_0, window_bounds = array<i64: 1>}, {transform_indices = @transform_1, window_bounds = array<i64: 2, 8, 128>}, {transform_indices = @transform_2, window_bounds = array<i64: 8, 128>}, {transform_indices = @transform_3, window_bounds = array<i64: 8, 128>}]} {
    %c0_i32 = arith.constant 0 : i32
    %0 = arith.cmpi eq, %arg1, %c0_i32 : i32
    %1 = arith.extui %0 : i1 to i32
    %c0_i32_0 = arith.constant 0 : i32
    %2 = arith.cmpi ne, %1, %c0_i32_0 : i32
    scf.if %2 {
      %cst_16 = arith.constant 0.000000e+00 : f32
      %36 = vector.broadcast %cst_16 : f32 to vector<8x128xf32>
      %c0_17 = arith.constant 0 : index
      %c0_18 = arith.constant 0 : index
      %37 = vector.load %arg6[%c0_17, %c0_18] : memref<8x128xf32, #tpu.memory_space<vmem>>, vector<8x128xf32>
      tpu.vector_store %arg6[%c0_17, %c0_18], %36 {strides = array<i32>} : memref<8x128xf32, #tpu.memory_space<vmem>>, vector<8x128xf32>,
    } else {
    }
    %c0 = arith.constant 0 : index
    %c0_1 = arith.constant 0 : index
    %c0_2 = arith.constant 0 : index
    %3 = vector.load %arg3[%c0, %c0_1, %c0_2] : memref<2x8x128xf32, #tpu.memory_space<vmem>>, vector<1x8x128xf32>
    %4 = vector.shape_cast %3 : vector<1x8x128xf32> to vector<8x128xf32>
    %c1 = arith.constant 1 : index
    %c0_3 = arith.constant 0 : index
    %c0_4 = arith.constant 0 : index
    %5 = vector.load %arg3[%c1, %c0_3, %c0_4] : memref<2x8x128xf32, #tpu.memory_space<vmem>>, vector<1x8x128xf32>
    %6 = vector.shape_cast %5 : vector<1x8x128xf32> to vector<8x128xf32>
    %c0_5 = arith.constant 0 : index
    %7 = memref.load %arg2[%c0_5] : memref<1xf32, #tpu.memory_space<smem>>
    %8 = vector.broadcast %7 : f32 to vector<8x128xf32>
    %9 = arith.addf %6, %8 : vector<8x128xf32>
    %c0_6 = arith.constant 0 : index
    %c0_7 = arith.constant 0 : index
    %10 = vector.load %arg4[%c0_6, %c0_7] : memref<8x128xf32, #tpu.memory_space<vmem>>, vector<8x128xf32>
    %cst = arith.constant 0.000000e+00 : f32
    %11 = vector.broadcast %cst : f32 to vector<8x128xf32>
    %12 = arith.cmpf one, %9, %11 : vector<8x128xf32>
    %cst_8 = arith.constant 1.000000e+00 : f32
    %13 = vector.broadcast %cst_8 : f32 to vector<8x128xf32>
    %14 = arith.select %12, %9, %13 : vector<8x128xi1>, vector<8x128xf32>
    %15 = arith.subf %4, %10 : vector<8x128xf32>
    %16 = tpu.reciprocal %14 {approx = true} : vector<8x128xf32> -> vector<8x128xf32>
    %17 = arith.mulf %15, %15 : vector<8x128xf32>
    %18 = arith.mulf %17, %16 : vector<8x128xf32>
    %19 = math.log %14 : vector<8x128xf32>
    %20 = arith.addf %18, %19 : vector<8x128xf32>
    %cst_9 = arith.constant 0.000000e+00 : f32
    %21 = vector.broadcast %cst_9 : f32 to vector<8x128xf32>
    %22 = arith.select %12, %20, %21 : vector<8x128xi1>, vector<8x128xf32>
    %c1_i32 = arith.constant 1 : i32
    %23 = arith.muli %arg0, %c1_i32 : i32
    %24 = arith.addi %23, %arg1 : i32
    %c8_i32 = arith.constant 8 : i32
    %25 = arith.muli %24, %c8_i32 : i32
    %c8_i32_10 = arith.constant 8 : i32
    %26 = arith.addi %25, %c8_i32_10 : i32
    %c8_i32_11 = arith.constant 8 : i32
    %27 = arith.cmpi sgt, %26, %c8_i32_11 : i32
    %true = arith.constant true
    %28 = arith.xori %27, %true : i1
    %29 = arith.extui %28 : i1 to i32
    %c0_i32_12 = arith.constant 0 : i32
    %30 = arith.cmpi ne, %29, %c0_i32_12 : i32
    scf.if %30 {
      %c0_16 = arith.constant 0 : index
      %c0_17 = arith.constant 0 : index
      %36 = vector.load %arg6[%c0_16, %c0_17] : memref<8x128xf32, #tpu.memory_space<vmem>>, vector<8x128xf32>
      %37 = vector.shape_cast %22 : vector<8x128xf32> to vector<1x8x128xf32>
      %cst_18 = arith.constant dense<0.000000e+00> : vector<8x128xf32>
      %38 = vector.multi_reduction <add>, %37, %cst_18 [0] : vector<1x8x128xf32> to vector<8x128xf32>
      %39 = arith.addf %36, %38 : vector<8x128xf32>
      %c0_19 = arith.constant 0 : index
      %c0_20 = arith.constant 0 : index
      %40 = vector.load %arg6[%c0_19, %c0_20] : memref<8x128xf32, #tpu.memory_space<vmem>>, vector<8x128xf32>
      tpu.vector_store %arg6[%c0_19, %c0_20], %39 {strides = array<i32>} : memref<8x128xf32, #tpu.memory_space<vmem>>, vector<8x128xf32>,
    } else {
    }
    %31 = arith.extui %27 : i1 to i32
    %c0_i32_13 = arith.constant 0 : i32
    %32 = arith.cmpi ne, %31, %c0_i32_13 : i32
    scf.if %32 {
      %c8_i32_16 = arith.constant 8 : i32
      %36 = arith.subi %c8_i32_16, %25 : i32
      %37 = tpu.iota {dimensions = array<i32: 0>} : vector<8x128xi32>
      %38 = vector.broadcast %36 : i32 to vector<8x128xi32>
      %39 = arith.cmpi slt, %37, %38 : vector<8x128xi32>
      %cst_17 = arith.constant 0.000000e+00 : f32
      %40 = vector.broadcast %cst_17 : f32 to vector<8x128xf32>
      %41 = arith.select %39, %22, %40 : vector<8x128xi1>, vector<8x128xf32>
      %c0_18 = arith.constant 0 : index
      %c0_19 = arith.constant 0 : index
      %42 = vector.load %arg6[%c0_18, %c0_19] : memref<8x128xf32, #tpu.memory_space<vmem>>, vector<8x128xf32>
      %43 = vector.shape_cast %41 : vector<8x128xf32> to vector<1x8x128xf32>
      %cst_20 = arith.constant dense<0.000000e+00> : vector<8x128xf32>
      %44 = vector.multi_reduction <add>, %43, %cst_20 [0] : vector<1x8x128xf32> to vector<8x128xf32>
      %45 = arith.addf %42, %44 : vector<8x128xf32>
      %c0_21 = arith.constant 0 : index
      %c0_22 = arith.constant 0 : index
      %46 = vector.load %arg6[%c0_21, %c0_22] : memref<8x128xf32, #tpu.memory_space<vmem>>, vector<8x128xf32>
      tpu.vector_store %arg6[%c0_21, %c0_22], %45 {strides = array<i32>} : memref<8x128xf32, #tpu.memory_space<vmem>>, vector<8x128xf32>,
    } else {
    }
    %c0_i32_14 = arith.constant 0 : i32
    %33 = arith.cmpi eq, %arg1, %c0_i32_14 : i32
    %34 = arith.extui %33 : i1 to i32
    %c0_i32_15 = arith.constant 0 : i32
    %35 = arith.cmpi ne, %34, %c0_i32_15 : i32
    scf.if %35 {
      %c0_16 = arith.constant 0 : index
      %c0_17 = arith.constant 0 : index
      %36 = vector.load %arg6[%c0_16, %c0_17] : memref<8x128xf32, #tpu.memory_space<vmem>>, vector<8x128xf32>
      %c0_18 = arith.constant 0 : index
      %c0_19 = arith.constant 0 : index
      %37 = vector.load %arg5[%c0_18, %c0_19] : memref<8x128xf32, #tpu.memory_space<vmem>>, vector<8x128xf32>
      tpu.vector_store %arg5[%c0_18, %c0_19], %36 {strides = array<i32>} : memref<8x128xf32, #tpu.memory_space<vmem>>, vector<8x128xf32>,
    } else {
    }
    return
  }
  func.func @transform_0(%arg0: i32, %arg1: i32) -> i32 {
    %c0_i32 = arith.constant 0 : i32
    %c0_i32_0 = arith.constant 0 : i32
    return %c0_i32 : i32
  }
  func.func @transform_1(%arg0: i32, %arg1: i32) -> (i32, i32, i32) {
    %c1_i32 = arith.constant 1 : i32
    %0 = arith.muli %arg0, %c1_i32 : i32
    %1 = arith.addi %0, %arg1 : i32
    %c0_i32 = arith.constant 0 : i32
    %2 = arith.minsi %1, %c0_i32 : i32
    %c0_i32_0 = arith.constant 0 : i32
    %c0_i32_1 = arith.constant 0 : i32
    %c0_i32_2 = arith.constant 0 : i32
    return %c0_i32_0, %2, %c0_i32_1 : i32, i32, i32
  }
  func.func @transform_2(%arg0: i32, %arg1: i32) -> (i32, i32) {
    %c1_i32 = arith.constant 1 : i32
    %0 = arith.muli %arg0, %c1_i32 : i32
    %1 = arith.addi %0, %arg1 : i32
    %c0_i32 = arith.constant 0 : i32
    %2 = arith.minsi %1, %c0_i32 : i32
    %c0_i32_0 = arith.constant 0 : i32
    %c0_i32_1 = arith.constant 0 : i32
    return %2, %c0_i32_0 : i32, i32
  }
  func.func @transform_3(%arg0: i32, %arg1: i32) -> (i32, i32) {
    %c0_i32 = arith.constant 0 : i32
    %c0_i32_0 = arith.constant 0 : i32
    return %arg0, %c0_i32 : i32, i32
  }
}

</mosaic_0001>

<llo_original>
// kernel: criterion_forward.1
$region0: #{criterion_forward.1}
  #allocation0 [shape = 'u32[]', space=smem, size = 0x4, offset = 0x4, fixed_abs, tag = 'smem constant byte address 0x4 - core index']
  #allocation1 [shape = 'u32[144,128]{1,0:T(1,128)}', space=vmem, size = 0x12000, scoped, tag = 'internal scratch']
  #allocation2 [shape = 'f32[8,128]{1,0:T(8,128)}', space=vmem, size = 0x1000, scoped, tag = 'scratch operand']
  #allocation3 [shape = 'f32[1]{0:T(128)S(6)}', space=smem, size = 0x200, scoped, tag = 'scoped memory for criterion_forward.1']
  %s0 = inlined_call_operand.<no memory space> [shape: f32[1], index: 0, kind: input, shape index: {}]
  %s1 = inlined_call_operand.vmem [shape: f32[2,8,128], index: 1, kind: input, shape index: {}]
  %s2 = inlined_call_operand.vmem [shape: f32[8,128], index: 2, kind: input, shape index: {}]
  %s3 = inlined_call_operand.vmem [shape: f32[16,128], index: 3, kind: output, shape index: {}]
  %s4 = sld [smem:[#allocation0]]
  $region61: #{criterion_forward.1} parent=0
    _
  %s6 = ssub.s32 1, %s4
  %s7 = scalar_select 0, %s6, %s4
  %8 = sst [smem:[#allocation3]] %s0
  loop: start=0, step=1, limit=4
  $region2: #{criterion_forward.1} parent=0 // loop_pre_header
    _
  $region3: #{criterion_forward.1} parent=0 // loop_header
    %s10 = sphi 0, %s14
    %p11 = scmp.ge.s32.totalorder %s10, 4
    %s17 = sphi 0, %s29
    %s18 = sphi 0, %s25
    %s19 = sphi 0, %s17
    %s20 = sphi 0, %s18
    %s21 = sphi 0, %s19
    %s22 = sphi 0, %s20
    %s30 = sphi 0, %s30
    %s32 = sphi 0, %s30
    %s33 = sphi 0, %s32
    %s47 = sphi 0, %s33
    %s59 = sphi 0, %s61
    %s62 = sphi 0, %s59
    %s63 = sphi 0, %s62
    %s79 = sphi 0, %s63
    %s91 = sphi 0, %s93
    %s94 = sphi 0, %s91
    %s95 = sphi 0, %s94
    %s111 = sphi 0, %s95
    %s117 = sphi 0, %s119
    %s120 = sphi 0, %s117
    %s121 = sphi 0, %s120
    %s137 = sphi 0, %s121
  $region4: #{criterion_forward.1} parent=0 // loop_header_branch
    %13 = sbr.rel (%p11) target = $region8
  $region5: #{criterion_forward.1} parent=0 // loop_body
    %s15 = ssub.s32 %s10, 1
    %s16 = ssub.s32 %s10, 2
    %s23 = sadd.s32 1, %s18
    %p24 = scmp.ge.s32.totalorder %s23, 1
    %s25 = scalar_select %p24, 0, %s23
    %s26 = sadd.s32 1, %s17
    %s27 = scalar_select %p24, %s26, %s17
    %p28 = scmp.ge.s32.totalorder %s27, 2
    %s29 = scalar_select %p28, 0, %s27
    %s31 = sadd.s32 %s30, 1
    %p34 = scmp.eq.s32.totalorder %s10, 1
    %p35 = scmp.ne.s32.totalorder %s30, %s32
    %p36 = scmp.eq.s32.totalorder %s10, 0
    %p37 = por %p35, %p36
    %p38 = scmp.ne.s32.totalorder %s30, %s32
    %p39 = scmp.eq.s32.totalorder %s15, 1
    %p40 = por %p38, %p39
    %p41 = scmp.ne.s32.totalorder %s32, %s33
    %p42 = scmp.eq.s32.totalorder %s15, 0
    %p43 = por %p41, %p42
    %p44 = scmp.ne.s32.totalorder %s32, %s33
    %p45 = scmp.eq.s32.totalorder %s16, 1
    %p46 = por %p44, %p45
    %p48 = scmp.ne.s32.totalorder %s33, %s47
    %p49 = scmp.eq.s32.totalorder %s16, 0
    %p50 = por %p48, %p49
    %s51 = sadd.s32 %s17, %s18
    %p52 = scmp.lt.s32.totalorder %s51, 0
    %s53 = scalar_select %p52, %s51, 0
    %s54 = sadd.s32 %s29, %s25
    %p55 = scmp.lt.s32.totalorder %s54, 0
    %s56 = scalar_select %p55, %s54, 0
    %s57 = ssub.s32 %s53, %s56
    %p58 = scmp.eq.s32.totalorder %s57, 0
    %s60 = sadd.s32 %s59, 1
    %s61 = scalar_select %p58, %s59, %s60
    %p64 = pneg %p58
    %p65 = scmp.eq.s32.totalorder %s10, 1
    %p66 = por %p64, %p65
    %p67 = scmp.ne.s32.totalorder %s59, %s62
    %p68 = scmp.eq.s32.totalorder %s10, 0
    %p69 = por %p67, %p68
    %p70 = scmp.ne.s32.totalorder %s59, %s62
    %p71 = scmp.eq.s32.totalorder %s15, 1
    %p72 = por %p70, %p71
    %p73 = scmp.ne.s32.totalorder %s62, %s63
    %p74 = scmp.eq.s32.totalorder %s15, 0
    %p75 = por %p73, %p74
    %p76 = scmp.ne.s32.totalorder %s62, %s63
    %p77 = scmp.eq.s32.totalorder %s16, 1
    %p78 = por %p76, %p77
    %p80 = scmp.ne.s32.totalorder %s63, %s79
    %p81 = scmp.eq.s32.totalorder %s16, 0
    %p82 = por %p80, %p81
    %s83 = sadd.s32 %s17, %s18
    %p84 = scmp.lt.s32.totalorder %s83, 0
    %s85 = scalar_select %p84, %s83, 0
    %s86 = sadd.s32 %s29, %s25
    %p87 = scmp.lt.s32.totalorder %s86, 0
    %s88 = scalar_select %p87, %s86, 0
    %s89 = ssub.s32 %s85, %s88
    %p90 = scmp.eq.s32.totalorder %s89, 0
    %s92 = sadd.s32 %s91, 1
    %s93 = scalar_select %p90, %s91, %s92
    %p96 = pneg %p90
    %p97 = scmp.eq.s32.totalorder %s10, 1
    %p98 = por %p96, %p97
    %p99 = scmp.ne.s32.totalorder %s91, %s94
    %p100 = scmp.eq.s32.totalorder %s10, 0
    %p101 = por %p99, %p100
    %p102 = scmp.ne.s32.totalorder %s91, %s94
    %p103 = scmp.eq.s32.totalorder %s15, 1
    %p104 = por %p102, %p103
    %p105 = scmp.ne.s32.totalorder %s94, %s95
    %p106 = scmp.eq.s32.totalorder %s15, 0
    %p107 = por %p105, %p106
    %p108 = scmp.ne.s32.totalorder %s94, %s95
    %p109 = scmp.eq.s32.totalorder %s16, 1
    %p110 = por %p108, %p109
    %p112 = scmp.ne.s32.totalorder %s95, %s111
    %p113 = scmp.eq.s32.totalorder %s16, 0
    %p114 = por %p112, %p113
    %s115 = ssub.s32 %s17, %s29
    %p116 = scmp.eq.s32.totalorder %s115, 0
    %s118 = sadd.s32 %s117, 1
    %s119 = scalar_select %p116, %s117, %s118
    %p122 = pneg %p116
    %p123 = scmp.eq.s32.totalorder %s10, 1
    %p124 = por %p122, %p123
    %p125 = scmp.ne.s32.totalorder %s117, %s120
    %p126 = scmp.eq.s32.totalorder %s10, 0
    %p127 = por %p125, %p126
    %p128 = scmp.ne.s32.totalorder %s117, %s120
    %p129 = scmp.eq.s32.totalorder %s15, 1
    %p130 = por %p128, %p129
    %p131 = scmp.ne.s32.totalorder %s120, %s121
    %p132 = scmp.eq.s32.totalorder %s15, 0
    %p133 = por %p131, %p132
    %p134 = scmp.ne.s32.totalorder %s120, %s121
    %p135 = scmp.eq.s32.totalorder %s16, 1
    %p136 = por %p134, %p135
    %p138 = scmp.ne.s32.totalorder %s121, %s137
    %p139 = scmp.eq.s32.totalorder %s16, 0
    %p140 = por %p138, %p139
    %p141 = scmp.le.s32.totalorder 1, %s10
    %p142 = scmp.lt.s32.totalorder %s10, 3
    %p143 = pnand %p141, %p142
    %p144 = pneg %p143
    // Predicated region
    $region9: #{criterion_forward.1} parent=5 // pred_check
      _
    $region10: #{criterion_forward.1} parent=5 // pred_check_branch
      %146 = sbr.rel (%p143) target = $region12
    $region11: #{criterion_forward.1} parent=5 // pred_region
      %s147 = ssub.s32 %s10, 1
      // Predicated region
      $region13: #{criterion_forward.1} parent=11 // pred_check
        %p148 = pneg %p43
      $region14: #{criterion_forward.1} parent=11 // pred_check_branch
        %150 = sbr.rel (%p148) target = $region16
      $region15: #{criterion_forward.1} parent=11 // pred_region
        _
      $region16: #{criterion_forward.1} parent=11 // pred_fallthru
        _
    $region12: #{criterion_forward.1} parent=5 // pred_fallthru
      _
    %p151 = scmp.lt.s32.totalorder %s10, 2
    // Predicated region
    $region17: #{criterion_forward.1} parent=5 // pred_check
      %p152 = pneg %p151
    $region18: #{criterion_forward.1} parent=5 // pred_check_branch
      %154 = sbr.rel (%p152) target = $region20
    $region19: #{criterion_forward.1} parent=5 // pred_region
      // Predicated region
      $region21: #{criterion_forward.1} parent=19 // pred_check
        %p155 = pneg %p69
      $region22: #{criterion_forward.1} parent=19 // pred_check_branch
        %157 = sbr.rel (%p155) target = $region24
      $region23: #{criterion_forward.1} parent=19 // pred_region
        %s158 = sadd.s32 %s17, %s18
        %p159 = scmp.lt.s32.totalorder %s158, 0
        %s160 = scalar_select %p159, %s158, 0
        %p161 = scmp.lt.s32.totalorder %s160, 0
        %s162 = scalar_select %p161, %s160, 0
        %s163 = smul.addr %s162, 8
        %s164 = scalar_lea.vmem %s1, %s163
        %s165 = sadd.s32 %s17, %s18
        %p166 = scmp.lt.s32.totalorder %s165, 0
        %s167 = scalar_select %p166, %s165, 0
      $region24: #{criterion_forward.1} parent=19 // pred_fallthru
        _
      // Predicated region
      $region25: #{criterion_forward.1} parent=19 // pred_check
        %p168 = pneg %p101
      $region26: #{criterion_forward.1} parent=19 // pred_check_branch
        %170 = sbr.rel (%p168) target = $region28
      $region27: #{criterion_forward.1} parent=19 // pred_region
        %s171 = sadd.s32 %s17, %s18
        %p172 = scmp.lt.s32.totalorder %s171, 0
        %s173 = scalar_select %p172, %s171, 0
        %p174 = scmp.lt.s32.totalorder %s173, 0
        %s175 = scalar_select %p174, %s173, 0
        %s176 = smul.addr %s175, 8
        %s177 = scalar_lea.vmem %s2, %s176
        %s178 = sadd.s32 %s17, %s18
        %p179 = scmp.lt.s32.totalorder %s178, 0
        %s180 = scalar_select %p179, %s178, 0
      $region28: #{criterion_forward.1} parent=19 // pred_fallthru
        _
    $region20: #{criterion_forward.1} parent=5 // pred_fallthru
      _
    %p181 = scmp.le.s32.totalorder 1, %s10
    %p182 = scmp.lt.s32.totalorder %s10, 3
    %p183 = pnand %p181, %p182
    %p184 = pneg %p183
    // Predicated region
    $region29: #{criterion_forward.1} parent=5 // pred_check
      _
    $region30: #{criterion_forward.1} parent=5 // pred_check_branch
      %186 = sbr.rel (%p183) target = $region32
    $region31: #{criterion_forward.1} parent=5 // pred_region
      %s187 = ssub.s32 %s10, 1
      %p188 = pneg %p43
      %p189 = pneg %p40
      %s190 = sadd.s32 %s19, %s20
      %p191 = scmp.lt.s32.totalorder %s190, 0
      %s192 = scalar_select %p191, %s190, 0
      %p193 = scmp.lt.s32.totalorder %s192, 0
      %s194 = scalar_select %p193, %s192, 0
      %s195 = smul.addr %s194, 8
      %s196 = scalar_lea.vmem %s1, %s195
      %p197 = pneg %p75
      %p198 = pneg %p72
      %s199 = sadd.s32 %s19, %s20
      %p200 = scmp.lt.s32.totalorder %s199, 0
      %s201 = scalar_select %p200, %s199, 0
      %p202 = scmp.lt.s32.totalorder %s201, 0
      %s203 = scalar_select %p202, %s201, 0
      %s204 = smul.addr %s203, 8
      %s205 = scalar_lea.vmem %s2, %s204
      %p206 = pneg %p107
      %p207 = pneg %p104
      %p208 = pneg %p133
      %p209 = pneg %p130
      %p210 = scmp.lt.s32.totalorder %s19, 1
      %s211 = scalar_select %p210, %s19, 1
      %s212 = smul.addr %s211, 8
      %s213 = scalar_lea.vmem %s3, %s212
      %s214 = sadd.s32 %s19, %s20
      %p215 = scmp.lt.s32.totalorder %s214, 0
      %s216 = scalar_select %p215, %s214, 0
      %p217 = scmp.lt.s32.totalorder %s216, 0
      %s218 = scalar_select %p217, %s216, 0
      %s219 = smul.addr %s218, 8
      %s220 = scalar_lea.vmem %s1, %s219
      %s221 = sadd.s32 %s19, %s20
      %p222 = scmp.lt.s32.totalorder %s221, 0
      %s223 = scalar_select %p222, %s221, 0
      %s224 = sadd.s32 %s19, %s20
      %p225 = scmp.lt.s32.totalorder %s224, 0
      %s226 = scalar_select %p225, %s224, 0
      %p227 = scmp.lt.s32.totalorder %s226, 0
      %s228 = scalar_select %p227, %s226, 0
      %s229 = smul.addr %s228, 8
      %s230 = scalar_lea.vmem %s2, %s229
      %s231 = sadd.s32 %s19, %s20
      %p232 = scmp.lt.s32.totalorder %s231, 0
      %s233 = scalar_select %p232, %s231, 0
      %p234 = scmp.lt.s32.totalorder %s19, 1
      %s235 = scalar_select %p234, %s19, 1
      %s236 = smul.addr %s235, 8
      %s237 = scalar_lea.vmem %s3, %s236
      %p238 = scmp.eq.s32.totalorder %s20, 0
      // Predicated region
      $region33: #{criterion_forward.1} parent=31 // pred_check
        %p239 = pneg %p238
      $region34: #{criterion_forward.1} parent=31 // pred_check_branch
        %241 = sbr.rel (%p239) target = $region36
      $region35: #{criterion_forward.1} parent=31 // pred_region
        %242 = vst [vmem:[#allocation2] sm:$0xff] 0.0
      $region36: #{criterion_forward.1} parent=31 // pred_fallthru
        _
      %v243 = vld [vmem:[%s220] sm:$0xff]
      %s244 = scalar_lea.vmem %s220, 8
      %v245 = vld [vmem:[%s244] sm:$0xff]
      %s246 = sld [smem:[#allocation3]]
      %v247 = vstv %s246
      %v248 = vadd.f32 %v245, %v247
      %v249 = vld [vmem:[%s230] sm:$0xff]
      %vm250 = vcmp.ne.f32.partialorder %v248, 0.0
      %v251 = vsel %vm250, %v248, 1.0
      %v252 = vsub.f32 %v243, %v249
      %v253 = vrcp.pop %v251
      %v254 = vmul.f32 %v252, %v252
      %v255 = vmul.f32 %v254, %v253
      %v256 = vlog2.pop %v251
      %v257 = vmul.f32 %v256, 0.6931472
      %v258 = vadd.f32 %v255, %v257
      %v259 = vsel %vm250, %v258, 0.0
      %s260 = sadd.s32 %s19, %s20
      %s261 = smul.u32 %s260, 8
      %s262 = sadd.s32 %s261, 8
      %p263 = scmp.gt.s32.totalorder %s262, 8
      %p264 = scmp.le.s32.totalorder %s262, 8
      // Predicated region
      $region37: #{criterion_forward.1} parent=31 // pred_check
        %p265 = pneg %p264
      $region38: #{criterion_forward.1} parent=31 // pred_check_branch
        %267 = sbr.rel (%p265) target = $region40
      $region39: #{criterion_forward.1} parent=31 // pred_region
        %v268 = vld [vmem:[#allocation2] sm:$0xff]
        %v269 = vadd.f32 %v259, 0.0
        %v270 = vadd.f32 %v268, %v269
        %271 = vst [vmem:[#allocation2] sm:$0xff] %v270
      $region40: #{criterion_forward.1} parent=31 // pred_fallthru
        _
      // Predicated region
      $region41: #{criterion_forward.1} parent=31 // pred_check
        %p272 = pneg %p263
      $region42: #{criterion_forward.1} parent=31 // pred_check_branch
        %274 = sbr.rel (%p272) target = $region44
      $region43: #{criterion_forward.1} parent=31 // pred_region
        %s275 = ssub.s32 8, %s261
        %v276 = vlaneseq
        %v277 = vshrl.u32 %v276, 7
        %v278 = vstv %s275
        %vm279 = vcmp.lt.s32.totalorder %v277, %v278
        %v280 = vsel %vm279, %v259, 0.0
        %v281 = vld [vmem:[#allocation2] sm:$0xff]
        %v282 = vadd.f32 %v280, 0.0
        %v283 = vadd.f32 %v281, %v282
        %284 = vst [vmem:[#allocation2] sm:$0xff] %v283
      $region44: #{criterion_forward.1} parent=31 // pred_fallthru
        _
      // Predicated region
      $region45: #{criterion_forward.1} parent=31 // pred_check
        %p285 = pneg %p238
      $region46: #{criterion_forward.1} parent=31 // pred_check_branch
        %287 = sbr.rel (%p285) target = $region48
      $region47: #{criterion_forward.1} parent=31 // pred_region
        %v288 = vld [vmem:[#allocation2] sm:$0xff]
        %289 = vst [vmem:[%s237] sm:$0xff] %v288
      $region48: #{criterion_forward.1} parent=31 // pred_fallthru
        _
      %p290 = scmp.lt.s32.totalorder %s19, 1
      %s291 = scalar_select %p290, %s19, 1
      %s292 = smul.addr %s291, 8
      %s293 = scalar_lea.vmem %s3, %s292
      // Predicated region
      $region49: #{criterion_forward.1} parent=31 // pred_check
        %p294 = pneg %p130
      $region50: #{criterion_forward.1} parent=31 // pred_check_branch
        %296 = sbr.rel (%p294) target = $region52
      $region51: #{criterion_forward.1} parent=31 // pred_region
        _
      $region52: #{criterion_forward.1} parent=31 // pred_fallthru
        _
    $region32: #{criterion_forward.1} parent=5 // pred_fallthru
      _
    %p297 = scmp.le.s32.totalorder 2, %s10
    // Predicated region
    $region53: #{criterion_forward.1} parent=5 // pred_check
      %p298 = pneg %p297
    $region54: #{criterion_forward.1} parent=5 // pred_check_branch
      %300 = sbr.rel (%p298) target = $region56
    $region55: #{criterion_forward.1} parent=5 // pred_region
      %s301 = ssub.s32 %s10, 2
      // Predicated region
      $region57: #{criterion_forward.1} parent=55 // pred_check
        %p302 = pneg %p136
      $region58: #{criterion_forward.1} parent=55 // pred_check_branch
        %304 = sbr.rel (%p302) target = $region60
      $region59: #{criterion_forward.1} parent=55 // pred_region
        %p305 = scmp.lt.s32.totalorder %s21, 1
        %s306 = scalar_select %p305, %s21, 1
        %s307 = smul.addr %s306, 8
        %s308 = scalar_lea.vmem %s3, %s307
      $region60: #{criterion_forward.1} parent=55 // pred_fallthru
        _
    $region56: #{criterion_forward.1} parent=5 // pred_fallthru
      _
  $region6: #{criterion_forward.1} parent=0 // loop_footer
    %s14 = sadd.s32 1, %s10
  $region7: #{criterion_forward.1} parent=0 // loop_footer_branch
    %9 = sbr.rel target = $region3
  $region8: #{criterion_forward.1} parent=0 // loop_exit
    _

</llo_original>
